<compile_context>
chip_gen: v7x
topology: tpu7x:2x2x1
jax: 0.10.0
libtpu: 0.0.40
codegen_flags: <defaults>
</compile_context>

<pallas_src>
import jax
import jax.numpy as jnp
from jax.experimental import pallas as pl
from jax.experimental.pallas import tpu as pltpu

GAMMA = 2.0   # module default gamma=2 (squared explicitly in-kernel)

_LANES = 128
_MAX_TILE_ROWS = 1024     # 1024 sublane-rows * 128 lanes = 131072 samples/step
_ROW_ALIGN = 32           # int8 min tile is (32, 128)
_PAD_DIFF = -1e30         # with padded target=3 this makes the padded loss == 0


def _round_up(x, m):
    return ((x + m - 1) // m) * m


def _focal_loss_kernel(tgt_ref, d_ref, out_ref):
    """One (tile_rows, 128) tile of samples -> (8, 128) partial loss sums.

    tgt_ref : (tile_rows, 128) int8 raw targets in {0,1,2,3} (padding = 3).
    d_ref   : (2, tile_rows, 128) f32 logit differences l1 - l0
              (index 0 = glasses head, index 1 = mask head; padding = -1e30).
    out_ref : (8, 128) f32 per-tile partial sums (summed + /N in the wrapper).
    """
    t = tgt_ref[...].astype(jnp.int32)
    d_g = d_ref[0]
    d_m = d_ref[1]

    # target == 0 -> (glasses=1, mask=0); 1 -> (1,1); 2 -> (0,1); 3 -> (0,0)
    g_is1 = t < 2
    m_is1 = jnp.logical_or(t == 1, t == 2)

    def binary_ce(d, pick1):
        # -log_softmax([l0, l1])[target] for C=2 expressed via the logit diff:
        #   picked class 1: softplus(-d); picked class 0: softplus(d)
        # stable softplus(z) = max(z, 0) + log(1 + exp(-|z|))  (matches the
        # max-shifted LSE of the reference bit-for-bit in structure).
        z = jnp.where(pick1, -d, d)
        return jnp.maximum(z, 0.0) + jnp.log(1.0 + jnp.exp(-jnp.abs(z)))

    g_ce = binary_ce(d_g, g_is1)
    m_ce = binary_ce(d_m, m_is1)

    # torch.stack([glasses_logp, mask_logp]).mean(dim=0)
    logp = 0.5 * (g_ce + m_ce)
    p = jnp.exp(-logp)
    w = 1.0 - p
    loss = w * w * logp          # gamma == 2 -> explicit square, no pow()

    # Reduce (tile_rows, 128) -> (8, 128) with pure vreg adds (no XLU):
    # the reshape only splits the sublane axis into whole vregs.
    tile_rows = loss.shape[0]
    out_ref[...] = jnp.sum(loss.reshape(tile_rows // 8, 8, _LANES), axis=0)


def convert_target_to_target_format(target):
    glasses_target = (target < 2).astype(jnp.int32)
    mask_target = ((target == 1) | (target == 2)).astype(jnp.int32)
    return glasses_target, mask_target


def focal_loss(glasses_logits, mask_logits, target):
    """glasses_logits, mask_logits: (N, 2) any float dtype; target: (N,) int."""
    n, c = glasses_logits.shape
    assert c == 2, "FocalLoss heads are binary (glasses / mask): C must be 2"
    if n == 0:
        # torch: mean over an empty tensor is NaN.
        return jnp.float32(float("nan"))

    rows = pl.cdiv(n, _LANES)
    tile_rows = min(_MAX_TILE_ROWS, _round_up(rows, _ROW_ALIGN))
    rows_pad = _round_up(rows, tile_rows)
    n_pad = rows_pad * _LANES
    grid = rows_pad // tile_rows

    # Logit differences in f32 (before any low-precision rounding), stacked
    # into a single lane-dense stream: one relayout pass, one DMA stream.
    gl = glasses_logits.astype(jnp.float32)
    ml = mask_logits.astype(jnp.float32)
    d = jnp.stack([gl[:, 1] - gl[:, 0], ml[:, 1] - ml[:, 0]], axis=0)  # (2, N)
    d = jnp.pad(d, ((0, 0), (0, n_pad - n)), constant_values=_PAD_DIFF)
    d = d.reshape(2, rows_pad, _LANES)

    # int8 targets (values 0..3); padding target = 3 + diff = -1e30 gives an
    # exact zero loss for padded samples, so no in-kernel mask is needed.
    tgt = jnp.pad(target.astype(jnp.int8), (0, n_pad - n), constant_values=3)
    tgt = tgt.reshape(rows_pad, _LANES)

    partials = pl.pallas_call(
        _focal_loss_kernel,
        out_shape=jax.ShapeDtypeStruct((grid * 8, _LANES), jnp.float32),
        grid_spec=pltpu.PrefetchScalarGridSpec(
            num_scalar_prefetch=0,
            grid=(grid,),
            in_specs=[
                pl.BlockSpec((tile_rows, _LANES), lambda i: (i, 0)),      # tgt
                pl.BlockSpec((2, tile_rows, _LANES), lambda i: (0, i, 0)),  # d
            ],
            out_specs=pl.BlockSpec((8, _LANES), lambda i: (i, 0)),
        ),
        compiler_params=pltpu.CompilerParams(
            dimension_semantics=("parallel",)),
    )(tgt, d)

    # Final (tiny) reduction + mean over the TRUE batch size.
    return jnp.sum(partials) / jnp.float32(n)


def _focal_loss_ref(glasses_logits, mask_logits, target):
    """Pure-JAX reference mirroring the PyTorch forward."""
    gt, mt = convert_target_to_target_format(target)
    g_ce = -jnp.take_along_axis(jax.nn.log_softmax(glasses_logits, axis=-1),
                                gt[:, None], axis=-1)[:, 0]
    m_ce = -jnp.take_along_axis(jax.nn.log_softmax(mask_logits, axis=-1),
                                mt[:, None], axis=-1)[:, 0]
    logp = 0.5 * (g_ce + m_ce)
    p = jnp.exp(-logp)
    return jnp.mean((1.0 - p) ** GAMMA * logp)


if __name__ == "__main__":
    key = jax.random.PRNGKey(0)
    k1, k2, k3, k4, k5, k6 = jax.random.split(key, 6)

    # Primary small check: batch of 8 samples, 2 classes per head, f32.
    N, C = 8, 2
    glasses_logits = jax.random.normal(k1, (N, C), dtype=jnp.float32)
    mask_logits = jax.random.normal(k2, (N, C), dtype=jnp.float32)
    target = jax.random.randint(k3, (N,), 0, 4, dtype=jnp.int32)

    loss = jax.block_until_ready(focal_loss(glasses_logits, mask_logits, target))
    ref = _focal_loss_ref(glasses_logits, mask_logits, target)
    assert jnp.allclose(loss, ref, rtol=1e-5, atol=1e-6), (loss, ref)

    # Secondary check: non-multiple-of-128 batch (exercises zero-loss padding)
    # with bf16 logits (exercises f32 diff computed before any downcast).
    N2 = 300
    gl2 = jax.random.normal(k4, (N2, C), dtype=jnp.float32).astype(jnp.bfloat16)
    ml2 = jax.random.normal(k5, (N2, C), dtype=jnp.float32).astype(jnp.bfloat16)
    tg2 = jax.random.randint(k6, (N2,), 0, 4, dtype=jnp.int32)

    loss2 = jax.block_until_ready(focal_loss(gl2, ml2, tg2))
    ref2 = _focal_loss_ref(gl2.astype(jnp.float32), ml2.astype(jnp.float32), tg2)
    assert jnp.allclose(loss2, ref2, rtol=1e-5, atol=1e-6), (loss2, ref2)

    print("KERNEL_OK")
</pallas_src>

<mosaic_0001>
module attributes {stable_mosaic.version = 11 : i64} {
  func.func @_focal_loss_kernel(%arg0: i32, %arg1: memref<32x128xi8, #tpu.memory_space<vmem>>, %arg2: memref<2x32x128xf32, #tpu.memory_space<vmem>>, %arg3: memref<8x128xf32, #tpu.memory_space<vmem>>) attributes {dimension_semantics = [#tpu.dimension_semantics<parallel>], iteration_bounds = array<i64: 1>, scalar_prefetch = 0 : i64, scratch_operands = 0 : i64, tpu.core_type = #tpu.core_type<tc>, window_params = [{transform_indices = @transform_0, window_bounds = array<i64: 32, 128>}, {transform_indices = @transform_1, window_bounds = array<i64: 2, 32, 128>}, {transform_indices = @transform_2, window_bounds = array<i64: 8, 128>}]} {
    %c0 = arith.constant 0 : index
    %c0_0 = arith.constant 0 : index
    %0 = vector.load %arg1[%c0, %c0_0] : memref<32x128xi8, #tpu.memory_space<vmem>>, vector<32x128xi8>
    %1 = arith.extsi %0 : vector<32x128xi8> to vector<32x128xi32>
    %c0_1 = arith.constant 0 : index
    %c0_2 = arith.constant 0 : index
    %c0_3 = arith.constant 0 : index
    %2 = vector.load %arg2[%c0_1, %c0_2, %c0_3] : memref<2x32x128xf32, #tpu.memory_space<vmem>>, vector<1x32x128xf32>
    %3 = vector.shape_cast %2 : vector<1x32x128xf32> to vector<32x128xf32>
    %c1 = arith.constant 1 : index
    %c0_4 = arith.constant 0 : index
    %c0_5 = arith.constant 0 : index
    %4 = vector.load %arg2[%c1, %c0_4, %c0_5] : memref<2x32x128xf32, #tpu.memory_space<vmem>>, vector<1x32x128xf32>
    %5 = vector.shape_cast %4 : vector<1x32x128xf32> to vector<32x128xf32>
    %c2_i32 = arith.constant 2 : i32
    %6 = vector.broadcast %c2_i32 : i32 to vector<32x128xi32>
    %7 = arith.cmpi slt, %1, %6 : vector<32x128xi32>
    %c1_i32 = arith.constant 1 : i32
    %8 = vector.broadcast %c1_i32 : i32 to vector<32x128xi32>
    %9 = arith.cmpi eq, %1, %8 : vector<32x128xi32>
    %c2_i32_6 = arith.constant 2 : i32
    %10 = vector.broadcast %c2_i32_6 : i32 to vector<32x128xi32>
    %11 = arith.cmpi eq, %1, %10 : vector<32x128xi32>
    %12 = arith.ori %9, %11 : vector<32x128xi1>
    %cst = arith.constant 0.000000e+00 : f32
    %13 = vector.broadcast %cst : f32 to vector<32x128xf32>
    %14 = arith.subf %13, %3 : vector<32x128xf32>
    %15 = arith.select %7, %14, %3 : vector<32x128xi1>, vector<32x128xf32>
    %cst_7 = arith.constant 0.000000e+00 : f32
    %16 = vector.broadcast %cst_7 : f32 to vector<32x128xf32>
    %17 = arith.maximumf %15, %16 : vector<32x128xf32>
    %18 = math.absf %15 : vector<32x128xf32>
    %cst_8 = arith.constant 0.000000e+00 : f32
    %19 = vector.broadcast %cst_8 : f32 to vector<32x128xf32>
    %20 = arith.subf %19, %18 : vector<32x128xf32>
    %21 = math.exp %20 : vector<32x128xf32>
    %cst_9 = arith.constant 1.000000e+00 : f32
    %22 = vector.broadcast %cst_9 : f32 to vector<32x128xf32>
    %23 = arith.addf %22, %21 : vector<32x128xf32>
    %24 = math.log %23 : vector<32x128xf32>
    %25 = arith.addf %17, %24 : vector<32x128xf32>
    %cst_10 = arith.constant 0.000000e+00 : f32
    %26 = vector.broadcast %cst_10 : f32 to vector<32x128xf32>
    %27 = arith.subf %26, %5 : vector<32x128xf32>
    %28 = arith.select %12, %27, %5 : vector<32x128xi1>, vector<32x128xf32>
    %cst_11 = arith.constant 0.000000e+00 : f32
    %29 = vector.broadcast %cst_11 : f32 to vector<32x128xf32>
    %30 = arith.maximumf %28, %29 : vector<32x128xf32>
    %31 = math.absf %28 : vector<32x128xf32>
    %cst_12 = arith.constant 0.000000e+00 : f32
    %32 = vector.broadcast %cst_12 : f32 to vector<32x128xf32>
    %33 = arith.subf %32, %31 : vector<32x128xf32>
    %34 = math.exp %33 : vector<32x128xf32>
    %cst_13 = arith.constant 1.000000e+00 : f32
    %35 = vector.broadcast %cst_13 : f32 to vector<32x128xf32>
    %36 = arith.addf %35, %34 : vector<32x128xf32>
    %37 = math.log %36 : vector<32x128xf32>
    %38 = arith.addf %30, %37 : vector<32x128xf32>
    %39 = arith.addf %25, %38 : vector<32x128xf32>
    %cst_14 = arith.constant 5.000000e-01 : f32
    %40 = vector.broadcast %cst_14 : f32 to vector<32x128xf32>
    %41 = arith.mulf %40, %39 : vector<32x128xf32>
    %cst_15 = arith.constant 0.000000e+00 : f32
    %42 = vector.broadcast %cst_15 : f32 to vector<32x128xf32>
    %43 = arith.subf %42, %41 : vector<32x128xf32>
    %44 = math.exp %43 : vector<32x128xf32>
    %cst_16 = arith.constant 1.000000e+00 : f32
    %45 = vector.broadcast %cst_16 : f32 to vector<32x128xf32>
    %46 = arith.subf %45, %44 : vector<32x128xf32>
    %47 = arith.mulf %46, %46 : vector<32x128xf32>
    %48 = arith.mulf %47, %41 : vector<32x128xf32>
    %49 = vector.shape_cast %48 : vector<32x128xf32> to vector<4x8x128xf32>
    %cst_17 = arith.constant dense<0.000000e+00> : vector<8x128xf32>
    %50 = vector.multi_reduction <add>, %49, %cst_17 [0] : vector<4x8x128xf32> to vector<8x128xf32>
    %c0_18 = arith.constant 0 : index
    %c0_19 = arith.constant 0 : index
    %51 = vector.load %arg3[%c0_18, %c0_19] : memref<8x128xf32, #tpu.memory_space<vmem>>, vector<8x128xf32>
    tpu.vector_store %arg3[%c0_18, %c0_19], %50 {strides = array<i32>} : memref<8x128xf32, #tpu.memory_space<vmem>>, vector<8x128xf32>,
    return
  }
  func.func @transform_0(%arg0: i32) -> (i32, i32) {
    %c0_i32 = arith.constant 0 : i32
    %c0_i32_0 = arith.constant 0 : i32
    return %arg0, %c0_i32 : i32, i32
  }
  func.func @transform_1(%arg0: i32) -> (i32, i32, i32) {
    %c0_i32 = arith.constant 0 : i32
    %c0_i32_0 = arith.constant 0 : i32
    %c0_i32_1 = arith.constant 0 : i32
    return %c0_i32, %arg0, %c0_i32_0 : i32, i32, i32
  }
  func.func @transform_2(%arg0: i32) -> (i32, i32) {
    %c0_i32 = arith.constant 0 : i32
    %c0_i32_0 = arith.constant 0 : i32
    return %arg0, %c0_i32 : i32, i32
  }
}

</mosaic_0001>

<llo_original>
// kernel: tpu_custom_call.1
$region0: #{tpu_custom_call.1}
  #allocation0 [shape = 'u32[]', space=smem, size = 0x4, offset = 0x4, fixed_abs, tag = 'smem constant byte address 0x4 - core index']
  #allocation1 [shape = 'u32[144,128]{1,0:T(1,128)}', space=vmem, size = 0x12000, scoped, tag = 'internal scratch']
  %s0 = inlined_call_operand.hbm [shape: s8[32,128], index: 0, kind: input, shape index: {}]
  %s1 = inlined_call_operand.hbm [shape: f32[2,32,128], index: 1, kind: input, shape index: {}]
  %s2 = inlined_call_operand.hbm [shape: f32[8,128], index: 2, kind: output, shape index: {}]
  %s3 = sld [smem:[#allocation0]]
  $region26: #{tpu_custom_call.1} parent=0
    _
  %s5 = ssub.s32 1, %s3
  %s6 = scalar_select 0, %s5, %s3
  $region1: #{tpu_custom_call.1} parent=0
    #allocation2 [shape = 'u8[4096]{0}', space=vmem, size = 0x1000, scoped, tag = 'input window, operand 0, single buffered']
    #allocation3 [shape = 's32[1]{0}', space=sflag, size = 0x4, scoped, tag = 'scoped memory for tpu_custom_call.1']
    #allocation4 [shape = 's32[1]{0}', space=sflag, size = 0x4, scoped, tag = 'scoped memory for tpu_custom_call.1']
    #allocation5 [shape = 'u8[32768]{0}', space=vmem, size = 0x8000, scoped, tag = 'input window, operand 1, single buffered']
    #allocation6 [shape = 's32[1]{0}', space=sflag, size = 0x4, scoped, tag = 'scoped memory for tpu_custom_call.1']
    #allocation7 [shape = 'u8[4096]{0}', space=vmem, size = 0x1000, scoped, tag = 'output window, operand 0, single buffered']
    %7 = vsyncpa [#allocation3], 0
    %8 = vsyncpa [#allocation6], 0
    %9 = vsyncpa [#allocation4], 0
    // Predicated region
    $region2: #{tpu_custom_call.1} parent=1 // pred_check
      _
    $region3: #{tpu_custom_call.1} parent=1 // pred_check_branch
      %11 = sbr.rel (0) target = $region5
    $region4: #{tpu_custom_call.1} parent=1 // pred_region
      %s13 = ssub.s32 128, 128
      %14 = vsyncadd [#allocation3], %s13
      %s16 = sshll.u32 [#allocation2], 4
      %s17 = int_to_ptr.vmem [resolvable:$true] %s16
      %19 = dma.hbm_to_vmem [thread:$0]  %s0, 128, %s17, [#allocation3]
    $region5: #{tpu_custom_call.1} parent=1 // pred_fallthru
      _
    // Predicated region
    $region6: #{tpu_custom_call.1} parent=1 // pred_check
      _
    $region7: #{tpu_custom_call.1} parent=1 // pred_check_branch
      %21 = sbr.rel (0) target = $region9
    $region8: #{tpu_custom_call.1} parent=1 // pred_region
      %s23 = ssub.s32 1024, 1024
      %24 = vsyncadd [#allocation6], %s23
      %s25 = sshll.u32 [#allocation5], 4
      %s26 = int_to_ptr.vmem [resolvable:$true] %s25
      %31 = dma.hbm_to_vmem [thread:$0]  %s1, 1024, %s26, [#allocation6], 128, 128, 8
    $region9: #{tpu_custom_call.1} parent=1 // pred_fallthru
      _
    // Predicated region
    $region10: #{tpu_custom_call.1} parent=1 // pred_check
      _
    $region11: #{tpu_custom_call.1} parent=1 // pred_check_branch
      %33 = sbr.rel (0) target = $region13
    $region12: #{tpu_custom_call.1} parent=1 // pred_region
      %34 = dma.done [#allocation3], 128
    $region13: #{tpu_custom_call.1} parent=1 // pred_fallthru
      _
    // Predicated region
    $region14: #{tpu_custom_call.1} parent=1 // pred_check
      _
    $region15: #{tpu_custom_call.1} parent=1 // pred_check_branch
      %36 = sbr.rel (0) target = $region17
    $region16: #{tpu_custom_call.1} parent=1 // pred_region
      %37 = dma.done [#allocation6], 1024
    $region17: #{tpu_custom_call.1} parent=1 // pred_fallthru
      _
    %v38 = vld [vmem:[#allocation2] sm:$0xff]
    %v39 = vunpack.c.0.s8 %v38
    %v40 = vunpack.c.1.s8 %v38
    %v41 = vunpack.c.2.s8 %v38
    %v42 = vunpack.c.3.s8 %v38
    %v43 = vld [vmem:[#allocation5] sm:$0xff]
    %v44 = vld [vmem:[#allocation5 + $0x8] sm:$0xff]
    %v45 = vld [vmem:[#allocation5 + $0x10] sm:$0xff]
    %v46 = vld [vmem:[#allocation5 + $0x18] sm:$0xff]
    %s47 = scalar_lea.vmem [#allocation5], 32
    %v48 = vld [vmem:[%s47] sm:$0xff]
    %v49 = vld [vmem:[%s47 + $0x8] sm:$0xff]
    %v50 = vld [vmem:[%s47 + $0x10] sm:$0xff]
    %v51 = vld [vmem:[%s47 + $0x18] sm:$0xff]
    %vm52 = vcmp.lt.s32.totalorder %v39, 2
    %vm53 = vcmp.lt.s32.totalorder %v40, 2
    %vm54 = vcmp.lt.s32.totalorder %v41, 2
    %vm55 = vcmp.lt.s32.totalorder %v42, 2
    %vm56 = vcmp.eq.s32.totalorder %v39, 1
    %vm57 = vcmp.eq.s32.totalorder %v40, 1
    %vm58 = vcmp.eq.s32.totalorder %v41, 1
    %vm59 = vcmp.eq.s32.totalorder %v42, 1
    %vm60 = vcmp.eq.s32.totalorder %v39, 2
    %vm61 = vcmp.eq.s32.totalorder %v40, 2
    %vm62 = vcmp.eq.s32.totalorder %v41, 2
    %vm63 = vcmp.eq.s32.totalorder %v42, 2
    %vm64 = vmor %vm56, %vm60
    %vm65 = vmor %vm57, %vm61
    %vm66 = vmor %vm58, %vm62
    %vm67 = vmor %vm59, %vm63
    %v68 = vsub.f32 0.0, %v43
    %v69 = vsub.f32 0.0, %v44
    %v70 = vsub.f32 0.0, %v45
    %v71 = vsub.f32 0.0, %v46
    %v72 = vsel %vm52, %v68, %v43
    %v73 = vsel %vm53, %v69, %v44
    %v74 = vsel %vm54, %v70, %v45
    %v75 = vsel %vm55, %v71, %v46
    %v76 = vmax.f32 %v72, 0.0
    %v77 = vmax.f32 %v73, 0.0
    %v78 = vmax.f32 %v74, 0.0
    %v79 = vmax.f32 %v75, 0.0
    %v80 = vand.u32 2147483647, %v72
    %v81 = vand.u32 2147483647, %v73
    %v82 = vand.u32 2147483647, %v74
    %v83 = vand.u32 2147483647, %v75
    %v84 = vsub.f32 0.0, %v80
    %v85 = vsub.f32 0.0, %v81
    %v86 = vsub.f32 0.0, %v82
    %v87 = vsub.f32 0.0, %v83
    %v88 = vmul.f32 %v84, 1.442695
    %v89 = vpow.pop %v88
    %v90 = vmul.f32 %v85, 1.442695
    %v91 = vpow.pop %v90
    %v92 = vmul.f32 %v86, 1.442695
    %v93 = vpow.pop %v92
    %v94 = vmul.f32 %v87, 1.442695
    %v95 = vpow.pop %v94
    %v96 = vadd.f32 %v89, 1.0
    %v97 = vadd.f32 %v91, 1.0
    %v98 = vadd.f32 %v93, 1.0
    %v99 = vadd.f32 %v95, 1.0
    %v100 = vlog2.pop %v96
    %v101 = vmul.f32 %v100, 0.6931472
    %v102 = vlog2.pop %v97
    %v103 = vmul.f32 %v102, 0.6931472
    %v104 = vlog2.pop %v98
    %v105 = vmul.f32 %v104, 0.6931472
    %v106 = vlog2.pop %v99
    %v107 = vmul.f32 %v106, 0.6931472
    %v108 = vadd.f32 %v76, %v101
    %v109 = vadd.f32 %v77, %v103
    %v110 = vadd.f32 %v78, %v105
    %v111 = vadd.f32 %v79, %v107
    %v112 = vsub.f32 0.0, %v48
    %v113 = vsub.f32 0.0, %v49
    %v114 = vsub.f32 0.0, %v50
    %v115 = vsub.f32 0.0, %v51
    %v116 = vsel %vm64, %v112, %v48
    %v117 = vsel %vm65, %v113, %v49
    %v118 = vsel %vm66, %v114, %v50
    %v119 = vsel %vm67, %v115, %v51
    %v120 = vmax.f32 %v116, 0.0
    %v121 = vmax.f32 %v117, 0.0
    %v122 = vmax.f32 %v118, 0.0
    %v123 = vmax.f32 %v119, 0.0
    %v124 = vand.u32 2147483647, %v116
    %v125 = vand.u32 2147483647, %v117
    %v126 = vand.u32 2147483647, %v118
    %v127 = vand.u32 2147483647, %v119
    %v128 = vsub.f32 0.0, %v124
    %v129 = vsub.f32 0.0, %v125
    %v130 = vsub.f32 0.0, %v126
    %v131 = vsub.f32 0.0, %v127
    %v132 = vmul.f32 %v128, 1.442695
    %v133 = vpow.pop %v132
    %v134 = vmul.f32 %v129, 1.442695
    %v135 = vpow.pop %v134
    %v136 = vmul.f32 %v130, 1.442695
    %v137 = vpow.pop %v136
    %v138 = vmul.f32 %v131, 1.442695
    %v139 = vpow.pop %v138
    %v140 = vadd.f32 %v133, 1.0
    %v141 = vadd.f32 %v135, 1.0
    %v142 = vadd.f32 %v137, 1.0
    %v143 = vadd.f32 %v139, 1.0
    %v144 = vlog2.pop %v140
    %v145 = vmul.f32 %v144, 0.6931472
    %v146 = vlog2.pop %v141
    %v147 = vmul.f32 %v146, 0.6931472
    %v148 = vlog2.pop %v142
    %v149 = vmul.f32 %v148, 0.6931472
    %v150 = vlog2.pop %v143
    %v151 = vmul.f32 %v150, 0.6931472
    %v152 = vadd.f32 %v120, %v145
    %v153 = vadd.f32 %v121, %v147
    %v154 = vadd.f32 %v122, %v149
    %v155 = vadd.f32 %v123, %v151
    %v156 = vadd.f32 %v108, %v152
    %v157 = vadd.f32 %v109, %v153
    %v158 = vadd.f32 %v110, %v154
    %v159 = vadd.f32 %v111, %v155
    %v160 = vmul.f32 %v156, 0.5
    %v161 = vmul.f32 %v157, 0.5
    %v162 = vmul.f32 %v158, 0.5
    %v163 = vmul.f32 %v159, 0.5
    %v164 = vsub.f32 0.0, %v160
    %v165 = vsub.f32 0.0, %v161
    %v166 = vsub.f32 0.0, %v162
    %v167 = vsub.f32 0.0, %v163
    %v168 = vmul.f32 %v164, 1.442695
    %v169 = vpow.pop %v168
    %v170 = vmul.f32 %v165, 1.442695
    %v171 = vpow.pop %v170
    %v172 = vmul.f32 %v166, 1.442695
    %v173 = vpow.pop %v172
    %v174 = vmul.f32 %v167, 1.442695
    %v175 = vpow.pop %v174
    %v176 = vsub.f32 1.0, %v169
    %v177 = vsub.f32 1.0, %v171
    %v178 = vsub.f32 1.0, %v173
    %v179 = vsub.f32 1.0, %v175
    %v180 = vmul.f32 %v176, %v176
    %v181 = vmul.f32 %v177, %v177
    %v182 = vmul.f32 %v178, %v178
    %v183 = vmul.f32 %v179, %v179
    %v184 = vmul.f32 %v180, %v160
    %v185 = vmul.f32 %v181, %v161
    %v186 = vmul.f32 %v182, %v162
    %v187 = vmul.f32 %v183, %v163
    %v188 = vadd.f32 %v184, %v185
    %v189 = vadd.f32 %v188, %v186
    %v190 = vadd.f32 %v189, %v187
    %191 = vst [vmem:[#allocation7] sm:$0xff] %v190
    // Predicated region
    $region18: #{tpu_custom_call.1} parent=1 // pred_check
      _
    $region19: #{tpu_custom_call.1} parent=1 // pred_check_branch
      %193 = sbr.rel (0) target = $region21
    $region20: #{tpu_custom_call.1} parent=1 // pred_region
      %s195 = ssub.s32 128, 128
      %196 = vsyncadd [#allocation4], %s195
      %s198 = sshll.u32 [#allocation7], 4
      %s199 = int_to_ptr.vmem [resolvable:$true] %s198
      %201 = dma.vmem_to_hbm [thread:$0]  %s199, 128, %s2, [#allocation4]
    $region21: #{tpu_custom_call.1} parent=1 // pred_fallthru
      _
    // Predicated region
    $region22: #{tpu_custom_call.1} parent=1 // pred_check
      _
    $region23: #{tpu_custom_call.1} parent=1 // pred_check_branch
      %203 = sbr.rel (0) target = $region25
    $region24: #{tpu_custom_call.1} parent=1 // pred_region
      %204 = dma.done [#allocation4], 128
    $region25: #{tpu_custom_call.1} parent=1 // pred_fallthru
      _
    %205 = vsyncpa [#allocation3], 1
    %206 = vsyncpa [#allocation6], 1
    %207 = vsyncpa [#allocation4], 1

</llo_original>
